<compile_context>
chip_gen: v7x
topology: tpu7x:2x2x1
jax: 0.10.0
libtpu: 0.0.40
codegen_flags: <defaults>
</compile_context>

<pallas_src>
import functools

import jax
import jax.numpy as jnp
from jax.experimental import pallas as pl
from jax.experimental.pallas import tpu as pltpu

_LANE = 128          # vreg lane width
_SUBLANE = 8         # vreg sublane count
_MAX_BLOCK_R = 512   # lane tile (multiple of 128) -> ~85% of HBM roofline
_MAX_BLOCK_C = 256   # sublane tile (multiple of 8)
_VMEM_LIMIT = 32 * 1024 * 1024  # safe on v5e/v6e/v7x; tiles stay well below


def _pad_to(n: int, m: int) -> int:
    return ((n + m - 1) // m) * m


def _choose_tiles(C: int, R: int):
    """Pick lane/sublane tiles and the padded slab shape they divide."""
    block_r = min(_pad_to(R, _LANE), _MAX_BLOCK_R)
    Rp = _pad_to(R, block_r)
    block_c = min(_pad_to(C, _SUBLANE), _MAX_BLOCK_C)
    Cp = _pad_to(C, block_c)
    return Cp, Rp, block_c, block_r


def _pad2d_edge(x2d, Cp, Rp):
    """Edge padding: padded values replicate row/column edges, so they are
    neutral for per-row min/max and harmless for fake-quant (sliced off)."""
    C, R = x2d.shape
    if C == Cp and R == Rp:
        return x2d
    return jnp.pad(x2d, ((0, Cp - C), (0, Rp - R)), mode='edge')


# ---------------------------------------------------------------------------
# Pallas kernels
# ---------------------------------------------------------------------------
def _observer_kernel(x_ref, scale_ref, zp_ref, mn_ref, mx_ref, *,
                     quant_min, quant_max):
    """Per-row min/max accumulated across the R grid axis (resident output
    blocks), with the MinMax-observer epilogue fused into the last R tile."""
    j = pl.program_id(1)

    @pl.when(j == 0)
    def _init():
        mn_ref[...] = jnp.full(mn_ref.shape, jnp.inf, dtype=mn_ref.dtype)
        mx_ref[...] = jnp.full(mx_ref.shape, -jnp.inf, dtype=mx_ref.dtype)

    x = x_ref[...].astype(jnp.float32)
    mn_ref[...] = jnp.minimum(mn_ref[...], jnp.min(x, axis=-1, keepdims=True))
    mx_ref[...] = jnp.maximum(mx_ref[...], jnp.max(x, axis=-1, keepdims=True))

    @pl.when(j == pl.num_programs(1) - 1)
    def _finalize():
        mn = jnp.minimum(mn_ref[...], 0.0)
        mx = jnp.maximum(mx_ref[...], 0.0)
        scale = jnp.maximum((mx - mn) / float(quant_max - quant_min), 1e-8)
        zp = jnp.clip(jnp.round(float(quant_min) - mn / scale),
                      float(quant_min), float(quant_max))
        scale_ref[...] = scale
        zp_ref[...] = zp


def _fake_quant_kernel(x_ref, scale_ref, inv_scale_ref, zp_ref, o_ref, *,
                       quant_min, quant_max):
    """q = clamp(round(x * inv_scale + zp), qmin, qmax); out = scale*(q - zp).
    scale / inv_scale / zp are (block_c, 1) float32 columns (lane broadcast)."""
    x = x_ref[...].astype(jnp.float32)
    scale = scale_ref[...]
    inv_scale = inv_scale_ref[...]
    zp = zp_ref[...]
    q = jnp.round(x * inv_scale + zp)
    q = jnp.clip(q, float(quant_min), float(quant_max))
    o_ref[...] = (scale * (q - zp)).astype(o_ref.dtype)


# ---------------------------------------------------------------------------
# pallas_call wrappers (tiled, double-buffered by BlockSpec)
# ---------------------------------------------------------------------------
@functools.partial(jax.jit, static_argnames=("quant_min", "quant_max"))
def observe_per_channel(x2d, *, quant_min, quant_max):
    """Per-row observer. Returns (scale, zp, mn, mx), each shape (C,), f32."""
    C, R = x2d.shape
    Cp, Rp, bc, br = _choose_tiles(C, R)
    xp = _pad2d_edge(x2d, Cp, Rp)
    grid = (Cp // bc, Rp // br)
    kernel = functools.partial(_observer_kernel,
                               quant_min=quant_min, quant_max=quant_max)
    col = jax.ShapeDtypeStruct((Cp, 1), jnp.float32)
    col_spec = pl.BlockSpec((bc, 1), lambda i, j: (i, 0))
    scale, zp, mn, mx = pl.pallas_call(
        kernel,
        out_shape=(col, col, col, col),
        grid_spec=pltpu.PrefetchScalarGridSpec(
            num_scalar_prefetch=0,
            grid=grid,
            in_specs=[pl.BlockSpec((bc, br), lambda i, j: (i, j))],
            out_specs=(col_spec, col_spec, col_spec, col_spec),
        ),
        compiler_params=pltpu.CompilerParams(
            dimension_semantics=("parallel", "arbitrary"),
            vmem_limit_bytes=_VMEM_LIMIT),
    )(xp)
    return scale[:C, 0], zp[:C, 0], mn[:C, 0], mx[:C, 0]


@functools.partial(jax.jit, static_argnames=("quant_min", "quant_max"))
def fake_quant_per_channel(x2d, scale, zp, *, quant_min, quant_max):
    """Fake quant-dequant of a (C, R) slab with per-row scale / zero_point."""
    C, R = x2d.shape
    Cp, Rp, bc, br = _choose_tiles(C, R)
    xp = _pad2d_edge(x2d, Cp, Rp)

    scale = scale.astype(jnp.float32).reshape(-1, 1)
    zp = zp.astype(jnp.float32).reshape(-1, 1)
    if Cp != C:
        scale = jnp.pad(scale, ((0, Cp - C), (0, 0)), mode='edge')
        zp = jnp.pad(zp, ((0, Cp - C), (0, 0)), mode='edge')
    inv_scale = 1.0 / scale  # per-channel reciprocal, computed once per column

    grid = (Cp // bc, Rp // br)
    kernel = functools.partial(_fake_quant_kernel,
                               quant_min=quant_min, quant_max=quant_max)
    col_spec = pl.BlockSpec((bc, 1), lambda i, j: (i, 0))
    yp = pl.pallas_call(
        kernel,
        out_shape=jax.ShapeDtypeStruct((Cp, Rp), x2d.dtype),
        grid_spec=pltpu.PrefetchScalarGridSpec(
            num_scalar_prefetch=0,
            grid=grid,
            in_specs=[pl.BlockSpec((bc, br), lambda i, j: (i, j)),
                      col_spec, col_spec, col_spec],
            out_specs=pl.BlockSpec((bc, br), lambda i, j: (i, j)),
        ),
        compiler_params=pltpu.CompilerParams(
            dimension_semantics=("parallel", "parallel"),
            vmem_limit_bytes=_VMEM_LIMIT),
    )(xp, scale, inv_scale, zp)
    return yp[:C, :R]


def _flatten_to_slab(x):
    """Per-tensor path: flatten to a dense (rows, L) slab with L a multiple of
    128 (full sublane/lane utilization instead of a (1, N) slab)."""
    n = x.size
    L = _MAX_BLOCK_R if n >= _MAX_BLOCK_R else _pad_to(n, _LANE)
    rows = -(-n // L)
    flat = x.reshape(-1)
    pad = rows * L - n
    if pad:
        flat = jnp.concatenate([flat, jnp.broadcast_to(flat[-1], (pad,))])
    return flat.reshape(rows, L), n


# ---------------------------------------------------------------------------
# WeightQuantizer (observer = per-channel / per-tensor affine MinMax, int8)
# ---------------------------------------------------------------------------
class WeightQuantizer:
    """JAX/Pallas port of utils/quantize/fake_quantizer.WeightQuantizer.

    The observer class is not defined in the reference source; a conventional
    affine MinMax observer (quant_min=-128, quant_max=127) is used here.
    """

    def __init__(self, ch_axis=0, quant_min=-128, quant_max=127,
                 mode='calibration'):
        assert mode in ('calibration', 'quantization')
        self.ch_axis = ch_axis
        self.quant_min = quant_min
        self.quant_max = quant_max
        self.mode = mode
        self.pass_flag = False
        # buffers (float32, like register_buffer(torch.tensor(1.0)))
        self.scale = jnp.asarray(1.0, jnp.float32)
        self.zero_point = jnp.asarray(0.0, jnp.float32)

    # ---- layout helpers ----------------------------------------------------
    def _to_channel_major_2d(self, x):
        if self.ch_axis == 0:
            return x.reshape(x.shape[0], -1), None  # pure reshape, no HBM copy
        # TODO(synk): express the channel-major view via the BlockSpec
        # index_map for ch_axis not in (0, -1) instead of an HBM transpose.
        xm = jnp.moveaxis(x, self.ch_axis, 0)
        return xm.reshape(xm.shape[0], -1), xm.shape

    # ---- observer ------------------------------------------------------------
    def _observe(self, x):
        if self.ch_axis == -1:
            slab, _ = _flatten_to_slab(x)
            _, _, mn, mx = observe_per_channel(
                slab, quant_min=self.quant_min, quant_max=self.quant_max)
            mn_g = jnp.minimum(jnp.min(mn), 0.0)
            mx_g = jnp.maximum(jnp.max(mx), 0.0)
            scale = jnp.maximum(
                (mx_g - mn_g) / float(self.quant_max - self.quant_min), 1e-8)
            zp = jnp.clip(jnp.round(self.quant_min - mn_g / scale),
                          self.quant_min, self.quant_max)
            return scale.astype(jnp.float32), zp.astype(jnp.float32)

        x2d, _ = self._to_channel_major_2d(x)
        scale, zp, _, _ = observe_per_channel(
            x2d, quant_min=self.quant_min, quant_max=self.quant_max)
        return scale, zp

    # ---- fake quant ----------------------------------------------------------
    def _fake_quantize(self, x):
        qmin, qmax = self.quant_min, self.quant_max
        if self.ch_axis == -1:
            slab, n = _flatten_to_slab(x)
            rows = slab.shape[0]
            s_col = jnp.broadcast_to(
                self.scale.astype(jnp.float32).reshape(1, 1), (rows, 1))
            z_col = jnp.broadcast_to(
                self.zero_point.astype(jnp.float32).reshape(1, 1), (rows, 1))
            y = fake_quant_per_channel(slab, s_col, z_col,
                                       quant_min=qmin, quant_max=qmax)
            return y.reshape(-1)[:n].reshape(x.shape)

        x2d, moved_shape = self._to_channel_major_2d(x)
        y2d = fake_quant_per_channel(x2d, self.scale, self.zero_point,
                                     quant_min=qmin, quant_max=qmax)
        if self.ch_axis == 0:
            return y2d.reshape(x.shape)
        return jnp.moveaxis(y2d.reshape(moved_shape), 0, self.ch_axis)

    # ---- forward -------------------------------------------------------------
    def __call__(self, x):
        if self.mode == 'calibration':
            if not self.pass_flag:
                self.pass_flag = True
                if x.size > 0:
                    self.scale, self.zero_point = self._observe(x)
            return x
        return self._fake_quantize(x)


# ---------------------------------------------------------------------------
# Pure-JAX references
# ---------------------------------------------------------------------------
def _reference_fake_quant(x, scale, zp, ch_axis, qmin, qmax):
    # Uses x * (1/scale) like the kernel (equivalent to x/scale up to 1 ulp).
    scale = scale.astype(jnp.float32)
    zp = zp.astype(jnp.float32)
    if ch_axis != -1:
        shape = [1] * x.ndim
        shape[ch_axis] = -1
        scale = scale.reshape(shape)
        zp = zp.reshape(shape)
    inv = 1.0 / scale
    q = jnp.clip(jnp.round(x.astype(jnp.float32) * inv + zp), qmin, qmax)
    return (scale * (q - zp)).astype(x.dtype)


def _reference_observe(x, ch_axis, qmin, qmax):
    if ch_axis == -1:
        mn = jnp.minimum(jnp.min(x), 0.0)
        mx = jnp.maximum(jnp.max(x), 0.0)
    else:
        xm = jnp.moveaxis(x, ch_axis, 0)
        xm = xm.reshape(xm.shape[0], -1)
        mn = jnp.minimum(jnp.min(xm, axis=1), 0.0)
        mx = jnp.maximum(jnp.max(xm, axis=1), 0.0)
    scale = jnp.maximum((mx - mn) / float(qmax - qmin), 1e-8)
    zp = jnp.clip(jnp.round(qmin - mn / scale), qmin, qmax)
    return scale, zp


if __name__ == "__main__":
    key = jax.random.PRNGKey(0)
    # conv-style weight, OIHW: (out_ch=8, in_ch=4, kH=3, kW=3)
    w = jax.random.normal(key, (8, 4, 3, 3), dtype=jnp.float32)

    # ---- per-channel path (ch_axis=0) ----
    q = WeightQuantizer(ch_axis=0, mode='calibration')
    _ = q(w)
    _ = q(w)  # second calibration call is a no-op (pass_flag semantics)

    ref_scale, ref_zp = _reference_observe(w, 0, q.quant_min, q.quant_max)
    assert jnp.allclose(q.scale, ref_scale, atol=1e-6, rtol=1e-6)
    assert jnp.allclose(q.zero_point, ref_zp)

    q.mode = 'quantization'
    y = jax.block_until_ready(q(w))
    ref = _reference_fake_quant(w, q.scale, q.zero_point, 0,
                                q.quant_min, q.quant_max)
    assert y.shape == w.shape and y.dtype == w.dtype
    assert jnp.allclose(y, ref, atol=1e-5, rtol=1e-5)

    # ---- per-tensor path (ch_axis == -1) ----
    qt = WeightQuantizer(ch_axis=-1, mode='calibration')
    _ = qt(w)
    rs, rz = _reference_observe(w, -1, qt.quant_min, qt.quant_max)
    assert jnp.allclose(qt.scale, rs, atol=1e-6, rtol=1e-6)
    assert jnp.allclose(qt.zero_point, rz)

    qt.mode = 'quantization'
    y2 = jax.block_until_ready(qt(w))
    ref2 = _reference_fake_quant(w, qt.scale, qt.zero_point, -1,
                                 qt.quant_min, qt.quant_max)
    assert y2.shape == w.shape and y2.dtype == w.dtype
    assert jnp.allclose(y2, ref2, atol=1e-5, rtol=1e-5)

    print("KERNEL_OK")
</pallas_src>

<mosaic_0001>
module attributes {stable_mosaic.version = 11 : i64} {
  func.func @_observer_kernel(%arg0: i32, %arg1: i32, %arg2: memref<8x128xf32, #tpu.memory_space<vmem>>, %arg3: memref<8x1xf32, #tpu.memory_space<vmem>>, %arg4: memref<8x1xf32, #tpu.memory_space<vmem>>, %arg5: memref<8x1xf32, #tpu.memory_space<vmem>>, %arg6: memref<8x1xf32, #tpu.memory_space<vmem>>) attributes {dimension_semantics = [#tpu.dimension_semantics<parallel>, #tpu.dimension_semantics<arbitrary>], iteration_bounds = array<i64: 1, 1>, scalar_prefetch = 0 : i64, scratch_operands = 0 : i64, tpu.core_type = #tpu.core_type<tc>, window_params = [{transform_indices = @transform_0, window_bounds = array<i64: 8, 128>}, {transform_indices = @transform_1, window_bounds = array<i64: 8, 1>}, {transform_indices = @transform_2, window_bounds = array<i64: 8, 1>}, {transform_indices = @transform_3, window_bounds = array<i64: 8, 1>}, {transform_indices = @transform_4, window_bounds = array<i64: 8, 1>}]} {
    %c0_i32 = arith.constant 0 : i32
    %0 = arith.cmpi eq, %arg1, %c0_i32 : i32
    %1 = arith.extui %0 : i1 to i32
    %c0_i32_0 = arith.constant 0 : i32
    %2 = arith.cmpi ne, %1, %c0_i32_0 : i32
    scf.if %2 {
      %cst_13 = arith.constant 0x7F800000 : f32
      %17 = vector.broadcast %cst_13 : f32 to vector<8x1xf32>
      %c0_14 = arith.constant 0 : index
      %c0_15 = arith.constant 0 : index
      %18 = vector.load %arg5[%c0_14, %c0_15] : memref<8x1xf32, #tpu.memory_space<vmem>>, vector<8x1xf32>
      tpu.vector_store %arg5[%c0_14, %c0_15], %17 {strides = array<i32>} : memref<8x1xf32, #tpu.memory_space<vmem>>, vector<8x1xf32>,
      %cst_16 = arith.constant 0xFF800000 : f32
      %19 = vector.broadcast %cst_16 : f32 to vector<8x1xf32>
      %c0_17 = arith.constant 0 : index
      %c0_18 = arith.constant 0 : index
      %20 = vector.load %arg6[%c0_17, %c0_18] : memref<8x1xf32, #tpu.memory_space<vmem>>, vector<8x1xf32>
      tpu.vector_store %arg6[%c0_17, %c0_18], %19 {strides = array<i32>} : memref<8x1xf32, #tpu.memory_space<vmem>>, vector<8x1xf32>,
    } else {
    }
    %c0 = arith.constant 0 : index
    %c0_1 = arith.constant 0 : index
    %3 = vector.load %arg2[%c0, %c0_1] : memref<8x128xf32, #tpu.memory_space<vmem>>, vector<8x128xf32>
    %c0_2 = arith.constant 0 : index
    %c0_3 = arith.constant 0 : index
    %4 = vector.load %arg5[%c0_2, %c0_3] : memref<8x1xf32, #tpu.memory_space<vmem>>, vector<8x1xf32>
    %cst = arith.constant dense<0x7F800000> : vector<8xf32>
    %5 = vector.multi_reduction <minimumf>, %3, %cst [1] : vector<8x128xf32> to vector<8xf32>
    %6 = vector.shape_cast %5 : vector<8xf32> to vector<8x1xf32>
    %7 = arith.minimumf %4, %6 : vector<8x1xf32>
    %c0_4 = arith.constant 0 : index
    %c0_5 = arith.constant 0 : index
    %8 = vector.load %arg5[%c0_4, %c0_5] : memref<8x1xf32, #tpu.memory_space<vmem>>, vector<8x1xf32>
    tpu.vector_store %arg5[%c0_4, %c0_5], %7 {strides = array<i32>} : memref<8x1xf32, #tpu.memory_space<vmem>>, vector<8x1xf32>,
    %c0_6 = arith.constant 0 : index
    %c0_7 = arith.constant 0 : index
    %9 = vector.load %arg6[%c0_6, %c0_7] : memref<8x1xf32, #tpu.memory_space<vmem>>, vector<8x1xf32>
    %cst_8 = arith.constant dense<0xFF800000> : vector<8xf32>
    %10 = vector.multi_reduction <maximumf>, %3, %cst_8 [1] : vector<8x128xf32> to vector<8xf32>
    %11 = vector.shape_cast %10 : vector<8xf32> to vector<8x1xf32>
    %12 = arith.maximumf %9, %11 : vector<8x1xf32>
    %c0_9 = arith.constant 0 : index
    %c0_10 = arith.constant 0 : index
    %13 = vector.load %arg6[%c0_9, %c0_10] : memref<8x1xf32, #tpu.memory_space<vmem>>, vector<8x1xf32>
    tpu.vector_store %arg6[%c0_9, %c0_10], %12 {strides = array<i32>} : memref<8x1xf32, #tpu.memory_space<vmem>>, vector<8x1xf32>,
    %c0_i32_11 = arith.constant 0 : i32
    %14 = arith.cmpi eq, %arg1, %c0_i32_11 : i32
    %15 = arith.extui %14 : i1 to i32
    %c0_i32_12 = arith.constant 0 : i32
    %16 = arith.cmpi ne, %15, %c0_i32_12 : i32
    scf.if %16 {
      %c0_13 = arith.constant 0 : index
      %c0_14 = arith.constant 0 : index
      %17 = vector.load %arg5[%c0_13, %c0_14] : memref<8x1xf32, #tpu.memory_space<vmem>>, vector<8x1xf32>
      %cst_15 = arith.constant 0.000000e+00 : f32
      %18 = vector.broadcast %cst_15 : f32 to vector<8x1xf32>
      %19 = arith.minimumf %17, %18 : vector<8x1xf32>
      %c0_16 = arith.constant 0 : index
      %c0_17 = arith.constant 0 : index
      %20 = vector.load %arg6[%c0_16, %c0_17] : memref<8x1xf32, #tpu.memory_space<vmem>>, vector<8x1xf32>
      %cst_18 = arith.constant 0.000000e+00 : f32
      %21 = vector.broadcast %cst_18 : f32 to vector<8x1xf32>
      %22 = arith.maximumf %20, %21 : vector<8x1xf32>
      %23 = arith.subf %22, %19 : vector<8x1xf32>
      %cst_19 = arith.constant 2.550000e+02 : f32
      %24 = vector.broadcast %cst_19 : f32 to vector<8x1xf32>
      %25 = arith.divf %23, %24 : vector<8x1xf32>
      %cst_20 = arith.constant 9.99999993E-9 : f32
      %26 = vector.broadcast %cst_20 : f32 to vector<8x1xf32>
      %27 = arith.maximumf %25, %26 : vector<8x1xf32>
      %28 = arith.divf %19, %27 : vector<8x1xf32>
      %cst_21 = arith.constant -1.280000e+02 : f32
      %29 = vector.broadcast %cst_21 : f32 to vector<8x1xf32>
      %30 = arith.subf %29, %28 : vector<8x1xf32>
      %31 = math.roundeven %30 : vector<8x1xf32>
      %cst_22 = arith.constant -1.280000e+02 : f32
      %cst_23 = arith.constant 1.270000e+02 : f32
      %32 = vector.broadcast %cst_22 : f32 to vector<8x1xf32>
      %33 = arith.maximumf %32, %31 : vector<8x1xf32>
      %34 = vector.broadcast %cst_23 : f32 to vector<8x1xf32>
      %35 = arith.minimumf %34, %33 : vector<8x1xf32>
      %c0_24 = arith.constant 0 : index
      %c0_25 = arith.constant 0 : index
      %36 = vector.load %arg3[%c0_24, %c0_25] : memref<8x1xf32, #tpu.memory_space<vmem>>, vector<8x1xf32>
      tpu.vector_store %arg3[%c0_24, %c0_25], %27 {strides = array<i32>} : memref<8x1xf32, #tpu.memory_space<vmem>>, vector<8x1xf32>,
      %c0_26 = arith.constant 0 : index
      %c0_27 = arith.constant 0 : index
      %37 = vector.load %arg4[%c0_26, %c0_27] : memref<8x1xf32, #tpu.memory_space<vmem>>, vector<8x1xf32>
      tpu.vector_store %arg4[%c0_26, %c0_27], %35 {strides = array<i32>} : memref<8x1xf32, #tpu.memory_space<vmem>>, vector<8x1xf32>,
    } else {
    }
    return
  }
  func.func @transform_0(%arg0: i32, %arg1: i32) -> (i32, i32) {
    %c0_i32 = arith.constant 0 : i32
    return %arg0, %arg1 : i32, i32
  }
  func.func @transform_1(%arg0: i32, %arg1: i32) -> (i32, i32) {
    %c0_i32 = arith.constant 0 : i32
    %c0_i32_0 = arith.constant 0 : i32
    return %arg0, %c0_i32 : i32, i32
  }
  func.func @transform_2(%arg0: i32, %arg1: i32) -> (i32, i32) {
    %c0_i32 = arith.constant 0 : i32
    %c0_i32_0 = arith.constant 0 : i32
    return %arg0, %c0_i32 : i32, i32
  }
  func.func @transform_3(%arg0: i32, %arg1: i32) -> (i32, i32) {
    %c0_i32 = arith.constant 0 : i32
    %c0_i32_0 = arith.constant 0 : i32
    return %arg0, %c0_i32 : i32, i32
  }
  func.func @transform_4(%arg0: i32, %arg1: i32) -> (i32, i32) {
    %c0_i32 = arith.constant 0 : i32
    %c0_i32_0 = arith.constant 0 : i32
    return %arg0, %c0_i32 : i32, i32
  }
}

</mosaic_0001>

<llo_original>
// kernel: observe_per_channel.1
$region0: #{observe_per_channel.1}
  #allocation0 [shape = 'u32[]', space=smem, size = 0x4, offset = 0x4, fixed_abs, tag = 'smem constant byte address 0x4 - core index']
  #allocation1 [shape = 'u32[144,128]{1,0:T(1,128)}', space=vmem, size = 0x12000, scoped, tag = 'internal scratch']
  %s0 = inlined_call_operand.vmem [shape: f32[8,128], index: 0, kind: input, shape index: {}]
  %s1 = inlined_call_operand.vmem [shape: f32[8,1], index: 1, kind: output, shape index: {0}]
  %s2 = inlined_call_operand.vmem [shape: f32[8,1], index: 2, kind: output, shape index: {1}]
  %s3 = inlined_call_operand.vmem [shape: f32[8,1], index: 3, kind: output, shape index: {2}]
  %s4 = inlined_call_operand.vmem [shape: f32[8,1], index: 4, kind: output, shape index: {3}]
  %5 = xla_tuple %s1, %s2, %s3, %s4
  %s6 = sld [smem:[#allocation0]]
  $region46: #{observe_per_channel.1} parent=0
    _
  %s8 = ssub.s32 1, %s6
  %s9 = scalar_select 0, %s8, %s6
  // Predicated region
  $region2: #{observe_per_channel.1} parent=0 // pred_check
    _
  $region3: #{observe_per_channel.1} parent=0 // pred_check_branch
    %11 = sbr.rel (0) target = $region5
  $region4: #{observe_per_channel.1} parent=0 // pred_region
    _
  $region5: #{observe_per_channel.1} parent=0 // pred_fallthru
    _
  %p12 = scmp.eq.s32.totalorder 0, 0
  // Predicated region
  $region6: #{observe_per_channel.1} parent=0 // pred_check
    %p13 = pneg %p12
  $region7: #{observe_per_channel.1} parent=0 // pred_check_branch
    %15 = sbr.rel (%p13) target = $region9
  $region8: #{observe_per_channel.1} parent=0 // pred_region
    %vm16 = vcmask 7168
    %17 = vst.msk [vmem:[%s3] sm:$0xff] %vm16, inf
    %18 = vst.msk [vmem:[%s4] sm:$0xff] %vm16, -inf
  $region9: #{observe_per_channel.1} parent=0 // pred_fallthru
    _
  %v19 = vld [vmem:[%s0] sm:$0xff]
  %v20 = vld [vmem:[%s3] sm:$0xff]
  %21 = vmin.xlane.f32.xlu0 %v19
  %v22 = vpop.xlane.xlu0 %21
  %v23 = vmin.f32 %v20, %v22
  %vm24 = vcmask 7168
  %25 = vst.msk [vmem:[%s3] sm:$0xff] %vm24, %v23
  %v26 = vld [vmem:[%s4] sm:$0xff]
  %27 = vmax.xlane.f32.xlu0 %v19
  %v28 = vpop.xlane.xlu0 %27
  %v29 = vmax.f32 %v26, %v28
  %30 = vst.msk [vmem:[%s4] sm:$0xff] %vm24, %v29
  // Predicated region
  $region10: #{observe_per_channel.1} parent=0 // pred_check
    %p31 = pneg %p12
  $region11: #{observe_per_channel.1} parent=0 // pred_check_branch
    %33 = sbr.rel (%p31) target = $region13
  $region12: #{observe_per_channel.1} parent=0 // pred_region
    %v34 = vld [vmem:[%s3] sm:$0xff]
    %v35 = vmin.f32 %v34, 0.0
    %v36 = vld [vmem:[%s4] sm:$0xff]
    %v37 = vmax.f32 %v36, 0.0
    %v38 = vsub.f32 %v37, %v35
    %v39 = vrcp.pop 255.0
    %v40 = vmul.f32 %v38, %v39
    %v41 = vmax.f32 %v40, 1e-08
    %v42 = vrcp.pop %v41
    %v43 = vmul.f32 %v35, %v42
    %v44 = vsub.f32 -128.0, %v43
    %v45 = vround.ne.pseudo %v44
    %v46 = vmax.f32 %v45, -128.0
    %v47 = vmin.f32 %v46, 127.0
    %48 = vst.msk [vmem:[%s1] sm:$0xff] %vm24, %v41
    %49 = vst.msk [vmem:[%s2] sm:$0xff] %vm24, %v47
  $region13: #{observe_per_channel.1} parent=0 // pred_fallthru
    _
  // Predicated region
  $region14: #{observe_per_channel.1} parent=0 // pred_check
    _
  $region15: #{observe_per_channel.1} parent=0 // pred_check_branch
    %51 = sbr.rel (0) target = $region17
  $region16: #{observe_per_channel.1} parent=0 // pred_region
    _
  $region17: #{observe_per_channel.1} parent=0 // pred_fallthru
    _
  // Predicated region
  $region18: #{observe_per_channel.1} parent=0 // pred_check
    _
  $region19: #{observe_per_channel.1} parent=0 // pred_check_branch
    %53 = sbr.rel (0) target = $region21
  $region20: #{observe_per_channel.1} parent=0 // pred_region
    _
  $region21: #{observe_per_channel.1} parent=0 // pred_fallthru
    _
  // Predicated region
  $region22: #{observe_per_channel.1} parent=0 // pred_check
    _
  $region23: #{observe_per_channel.1} parent=0 // pred_check_branch
    %55 = sbr.rel (0) target = $region25
  $region24: #{observe_per_channel.1} parent=0 // pred_region
    _
  $region25: #{observe_per_channel.1} parent=0 // pred_fallthru
    _
  // Predicated region
  $region26: #{observe_per_channel.1} parent=0 // pred_check
    _
  $region27: #{observe_per_channel.1} parent=0 // pred_check_branch
    %57 = sbr.rel (0) target = $region29
  $region28: #{observe_per_channel.1} parent=0 // pred_region
    _
  $region29: #{observe_per_channel.1} parent=0 // pred_fallthru
    _
  // Predicated region
  $region30: #{observe_per_channel.1} parent=0 // pred_check
    _
  $region31: #{observe_per_channel.1} parent=0 // pred_check_branch
    %59 = sbr.rel (0) target = $region33
  $region32: #{observe_per_channel.1} parent=0 // pred_region
    _
  $region33: #{observe_per_channel.1} parent=0 // pred_fallthru
    _
  // Predicated region
  $region34: #{observe_per_channel.1} parent=0 // pred_check
    _
  $region35: #{observe_per_channel.1} parent=0 // pred_check_branch
    %61 = sbr.rel (0) target = $region37
  $region36: #{observe_per_channel.1} parent=0 // pred_region
    _
  $region37: #{observe_per_channel.1} parent=0 // pred_fallthru
    _
  // Predicated region
  $region38: #{observe_per_channel.1} parent=0 // pred_check
    _
  $region39: #{observe_per_channel.1} parent=0 // pred_check_branch
    %63 = sbr.rel (0) target = $region41
  $region40: #{observe_per_channel.1} parent=0 // pred_region
    _
  $region41: #{observe_per_channel.1} parent=0 // pred_fallthru
    _
  // Predicated region
  $region42: #{observe_per_channel.1} parent=0 // pred_check
    _
  $region43: #{observe_per_channel.1} parent=0 // pred_check_branch
    %65 = sbr.rel (0) target = $region45
  $region44: #{observe_per_channel.1} parent=0 // pred_region
    _
  $region45: #{observe_per_channel.1} parent=0 // pred_fallthru
    _

</llo_original>
